<compile_context>
chip_gen: v5e
topology: v5e:2x2
jax: 0.10.0
libtpu: 0.0.40
codegen_flags: <defaults>
</compile_context>

<pallas_src>
import jax
import jax.numpy as jnp
from jax.experimental import pallas as pl
from jax.experimental.pallas import tpu as pltpu

LN_EPS = 1e-5  # torch.nn.LayerNorm default


def _critic_kernel(x_ref,
                   w0_ref, b0_ref, g_ref, beta_ref,
                   w1_ref, b1_ref, w2_ref, b2_ref,
                   q_ref):
    # trunk: Linear -> LayerNorm -> Tanh (single full-K matmul, no in-kernel concat)
    h = (jnp.dot(x_ref[...], w0_ref[...], preferred_element_type=jnp.float32)
         + b0_ref[...])
    mu = jnp.mean(h, axis=-1, keepdims=True)
    var = jnp.mean((h - mu) * (h - mu), axis=-1, keepdims=True)
    h = (h - mu) * jax.lax.rsqrt(var + LN_EPS)
    h = jnp.tanh(h * g_ref[...] + beta_ref[...])

    # both Q-head first layers fused into one (H, 2H) MXU matmul + relu
    a = jnp.dot(h, w1_ref[...], preferred_element_type=jnp.float32) + b1_ref[...]
    a = jnp.maximum(a, 0.0)

    # final heads as a single block-diagonal (2H, 2) MXU matmul: removes the
    # per-step VPU multiply, two cross-lane reductions and the concatenate.
    q_ref[...] = (jnp.dot(a, w2_ref[...], preferred_element_type=jnp.float32)
                  + b2_ref[...])


def _round_up(x, m):
    return ((x + m - 1) // m) * m


def prepare_params(params):
    """One-time re-layout of PyTorch-style params into the fused kernel layout."""
    hidden = params["b0"].shape[1]
    # block-diagonal final-layer weight: W2_q1 in column 0 rows [0, H),
    # W2_q2 in column 1 rows [H, 2H)
    w2_bd = jnp.zeros((2 * hidden, 2), jnp.float32)
    w2_bd = w2_bd.at[:hidden, 0:1].set(params["w2_q1"])
    w2_bd = w2_bd.at[hidden:, 1:2].set(params["w2_q2"])
    return {
        "w0": params["w0"],
        "b0": params["b0"],
        "ln_g": params["ln_g"],
        "ln_b": params["ln_b"],
        # fused Q-head first layers: (H, 2H) / (1, 2H)
        "w1": jnp.concatenate([params["w1_q1"], params["w1_q2"]], axis=1),
        "b1": jnp.concatenate([params["b1_q1"], params["b1_q2"]], axis=1),
        # block-diagonal final layer (2H, 2) and (1, 2) bias
        "w2": w2_bd,
        "b2": jnp.concatenate([params["b2_q1"], params["b2_q2"]], axis=1),
    }


def critic_forward(obs, action, kparams, *, block_b=1024):
    """obs: (B, obs_dim), action: (B, act_dim) -> (q1, q2) each (B, 1) f32."""
    B = obs.shape[0]
    in_dim = obs.shape[1] + action.shape[1]
    hidden = kparams["b0"].shape[1]

    # Single concat in the wrapper; trunk then runs at full K-utilization.
    x = jnp.concatenate(
        [obs.astype(jnp.float32), action.astype(jnp.float32)], axis=-1)

    # ---- batch tiling ------------------------------------------------------
    b_pad = _round_up(B, 8)
    tb = min(block_b, b_pad)
    # v7x megacore: ensure >= 2 grid steps whenever the batch allows it so the
    # ("parallel",) axis actually shards across both TensorCores.
    if (b_pad // tb) < 2 and b_pad >= 16:
        tb = _round_up(pl.cdiv(b_pad, 2), 8)
    b_pad = _round_up(b_pad, tb)
    if b_pad != B:
        x = jnp.pad(x, ((0, b_pad - B), (0, 0)))
    grid = (b_pad // tb,)

    weight_order = ("w0", "b0", "ln_g", "ln_b", "w1", "b1", "w2", "b2")
    weight_args = tuple(kparams[k].astype(jnp.float32) for k in weight_order)

    # ---- VMEM budget / cost hint ------------------------------------------
    weight_bytes = 4 * sum(int(w.size) for w in weight_args)
    act_bytes = 4 * tb * (in_dim + 4 * hidden + 2)      # x tile, h, a, q
    vmem_limit = int(min(64 << 20, max(16 << 20, 2 * (weight_bytes + act_bytes))))

    flops = 2 * b_pad * (in_dim * hidden + 2 * hidden * hidden + 2 * 2 * hidden)
    transcendentals = b_pad * (hidden + 1)              # tanh row + rsqrt
    bytes_accessed = 4 * b_pad * (in_dim + 2) + weight_bytes

    def build(single_buffer_weights):
        def resident_spec(arr):
            # Weights stay VMEM-resident (constant block index); single-buffer
            # them so the VMEM they'd waste on a second buffer goes to the
            # batch tile instead.
            if single_buffer_weights:
                return pl.BlockSpec(arr.shape, lambda i: (0, 0),
                                    pipeline_mode=pl.Buffered(1))
            return pl.BlockSpec(arr.shape, lambda i: (0, 0))

        in_specs = [pl.BlockSpec((tb, in_dim), lambda i: (i, 0))] + [
            resident_spec(w) for w in weight_args
        ]
        return pl.pallas_call(
            _critic_kernel,
            out_shape=jax.ShapeDtypeStruct((b_pad, 2), jnp.float32),
            grid=grid,
            in_specs=in_specs,
            out_specs=pl.BlockSpec((tb, 2), lambda i: (i, 0)),
            compiler_params=pltpu.CompilerParams(
                dimension_semantics=("parallel",),
                vmem_limit_bytes=vmem_limit,
            ),
            cost_estimate=pl.CostEstimate(
                flops=flops,
                transcendentals=transcendentals,
                bytes_accessed=bytes_accessed,
            ),
        )

    try:
        q = build(True)(x, *weight_args)
    except Exception:
        # Fallback for jax versions that reject Buffered(1) on pallas_call specs.
        q = build(False)(x, *weight_args)

    q = q[:B]
    return q[:, 0:1], q[:, 1:2]


def init_params(key, obs_dim, action_dim, hidden_dim):
    """Deterministic synthetic parameters (shapes match the PyTorch module).

    PyTorch stores Linear weights as (out_features, in_features); here we keep
    them pre-transposed as (in_features, out_features) for row-major matmul.
    Biases / LN params are kept 2-D (1, F) for TPU-friendly broadcasting.
    """
    in_dim = obs_dim + action_dim
    ks = jax.random.split(key, 6)
    scale = 0.1
    return {
        # trunk
        "w0": scale * jax.random.normal(ks[0], (in_dim, hidden_dim), jnp.float32),
        "b0": jnp.zeros((1, hidden_dim), jnp.float32),
        "ln_g": jnp.ones((1, hidden_dim), jnp.float32),
        "ln_b": jnp.zeros((1, hidden_dim), jnp.float32),
        # Q1
        "w1_q1": scale * jax.random.normal(ks[1], (hidden_dim, hidden_dim), jnp.float32),
        "b1_q1": jnp.zeros((1, hidden_dim), jnp.float32),
        "w2_q1": scale * jax.random.normal(ks[2], (hidden_dim, 1), jnp.float32),
        "b2_q1": jnp.zeros((1, 1), jnp.float32),
        # Q2
        "w1_q2": scale * jax.random.normal(ks[3], (hidden_dim, hidden_dim), jnp.float32),
        "b1_q2": jnp.zeros((1, hidden_dim), jnp.float32),
        "w2_q2": scale * jax.random.normal(ks[4], (hidden_dim, 1), jnp.float32),
        "b2_q2": jnp.zeros((1, 1), jnp.float32),
    }


def _reference(obs, action, p):
    x = jnp.concatenate([obs, action], axis=-1)
    h = x @ p["w0"] + p["b0"]
    mu = jnp.mean(h, axis=-1, keepdims=True)
    var = jnp.mean((h - mu) ** 2, axis=-1, keepdims=True)
    h = (h - mu) / jnp.sqrt(var + LN_EPS) * p["ln_g"] + p["ln_b"]
    h = jnp.tanh(h)
    q1 = jnp.maximum(h @ p["w1_q1"] + p["b1_q1"], 0.0) @ p["w2_q1"] + p["b2_q1"]
    q2 = jnp.maximum(h @ p["w1_q2"] + p["b1_q2"], 0.0) @ p["w2_q2"] + p["b2_q2"]
    return q1, q2


if __name__ == "__main__":
    obs_dim, action_dim, hidden_dim = 12, 4, 32
    batch = 2

    key = jax.random.PRNGKey(0)
    k_obs, k_act, k_par = jax.random.split(key, 3)
    obs = jax.random.normal(k_obs, (batch, obs_dim), jnp.float32)
    action = jax.random.normal(k_act, (batch, action_dim), jnp.float32)
    params = init_params(k_par, obs_dim, action_dim, hidden_dim)

    kparams = prepare_params(params)            # one-time weight re-layout
    q1, q2 = critic_forward(obs, action, kparams)
    jax.block_until_ready((q1, q2))

    r1, r2 = _reference(obs, action, params)
    assert q1.shape == (batch, 1) and q2.shape == (batch, 1)
    assert jnp.allclose(q1, r1, atol=1e-5, rtol=1e-5)
    assert jnp.allclose(q2, r2, atol=1e-5, rtol=1e-5)

    print("KERNEL_OK")
</pallas_src>

<mosaic_0001>
module attributes {stable_mosaic.version = 11 : i64} {
  func.func @_critic_kernel(%arg0: i32, %arg1: memref<8x16xf32, #tpu.memory_space<vmem>>, %arg2: memref<16x32xf32, #tpu.memory_space<vmem>>, %arg3: memref<1x32xf32, #tpu.memory_space<vmem>>, %arg4: memref<1x32xf32, #tpu.memory_space<vmem>>, %arg5: memref<1x32xf32, #tpu.memory_space<vmem>>, %arg6: memref<32x64xf32, #tpu.memory_space<vmem>>, %arg7: memref<1x64xf32, #tpu.memory_space<vmem>>, %arg8: memref<64x2xf32, #tpu.memory_space<vmem>>, %arg9: memref<1x2xf32, #tpu.memory_space<vmem>>, %arg10: memref<8x2xf32, #tpu.memory_space<vmem>>) attributes {dimension_semantics = [#tpu.dimension_semantics<parallel>], iteration_bounds = array<i64: 1>, scalar_prefetch = 0 : i64, scratch_operands = 0 : i64, tpu.core_type = #tpu.core_type<tc>, window_params = [{transform_indices = @transform_0, window_bounds = array<i64: 8, 16>}, {pipeline_mode = #tpu.pipeline_mode<synchronous>, transform_indices = @transform_1, window_bounds = array<i64: 16, 32>}, {pipeline_mode = #tpu.pipeline_mode<synchronous>, transform_indices = @transform_2, window_bounds = array<i64: 1, 32>}, {pipeline_mode = #tpu.pipeline_mode<synchronous>, transform_indices = @transform_3, window_bounds = array<i64: 1, 32>}, {pipeline_mode = #tpu.pipeline_mode<synchronous>, transform_indices = @transform_4, window_bounds = array<i64: 1, 32>}, {pipeline_mode = #tpu.pipeline_mode<synchronous>, transform_indices = @transform_5, window_bounds = array<i64: 32, 64>}, {pipeline_mode = #tpu.pipeline_mode<synchronous>, transform_indices = @transform_6, window_bounds = array<i64: 1, 64>}, {pipeline_mode = #tpu.pipeline_mode<synchronous>, transform_indices = @transform_7, window_bounds = array<i64: 64, 2>}, {pipeline_mode = #tpu.pipeline_mode<synchronous>, transform_indices = @transform_8, window_bounds = array<i64: 1, 2>}, {transform_indices = @transform_9, window_bounds = array<i64: 8, 2>}]} {
    %c0 = arith.constant 0 : index
    %c0_0 = arith.constant 0 : index
    %0 = vector.load %arg1[%c0, %c0_0] : memref<8x16xf32, #tpu.memory_space<vmem>>, vector<8x16xf32>
    %c0_1 = arith.constant 0 : index
    %c0_2 = arith.constant 0 : index
    %1 = vector.load %arg2[%c0_1, %c0_2] : memref<16x32xf32, #tpu.memory_space<vmem>>, vector<16x32xf32>
    %cst = arith.constant dense<0.000000e+00> : vector<8x32xf32>
    %2 = tpu.matmul %0, %1, %cst {dimension_numbers = #tpu.dot_dimension_numbers<[1], [0], [0], [1], [0, 0, 1, 1], [], []>} : vector<8x16xf32>, vector<16x32xf32>, vector<8x32xf32> -> vector<8x32xf32>
    %c0_3 = arith.constant 0 : index
    %c0_4 = arith.constant 0 : index
    %3 = vector.load %arg3[%c0_3, %c0_4] : memref<1x32xf32, #tpu.memory_space<vmem>>, vector<1x32xf32>
    %4 = vector.broadcast %3 : vector<1x32xf32> to vector<8x32xf32>
    %5 = arith.addf %2, %4 : vector<8x32xf32>
    %cst_5 = arith.constant dense<0.000000e+00> : vector<8xf32>
    %6 = vector.multi_reduction <add>, %5, %cst_5 [1] : vector<8x32xf32> to vector<8xf32>
    %7 = vector.shape_cast %6 : vector<8xf32> to vector<8x1xf32>
    %cst_6 = arith.constant 3.200000e+01 : f32
    %8 = vector.broadcast %cst_6 : f32 to vector<8x1xf32>
    %9 = arith.divf %7, %8 : vector<8x1xf32>
    %10 = vector.broadcast %9 : vector<8x1xf32> to vector<8x32xf32>
    %11 = arith.subf %5, %10 : vector<8x32xf32>
    %12 = vector.broadcast %9 : vector<8x1xf32> to vector<8x32xf32>
    %13 = arith.subf %5, %12 : vector<8x32xf32>
    %14 = arith.mulf %11, %13 : vector<8x32xf32>
    %cst_7 = arith.constant dense<0.000000e+00> : vector<8xf32>
    %15 = vector.multi_reduction <add>, %14, %cst_7 [1] : vector<8x32xf32> to vector<8xf32>
    %16 = vector.shape_cast %15 : vector<8xf32> to vector<8x1xf32>
    %cst_8 = arith.constant 3.200000e+01 : f32
    %17 = vector.broadcast %cst_8 : f32 to vector<8x1xf32>
    %18 = arith.divf %16, %17 : vector<8x1xf32>
    %19 = vector.broadcast %9 : vector<8x1xf32> to vector<8x32xf32>
    %20 = arith.subf %5, %19 : vector<8x32xf32>
    %cst_9 = arith.constant 9.99999974E-6 : f32
    %21 = vector.broadcast %cst_9 : f32 to vector<8x1xf32>
    %22 = arith.addf %18, %21 : vector<8x1xf32>
    %23 = math.rsqrt %22 : vector<8x1xf32>
    %24 = vector.broadcast %23 : vector<8x1xf32> to vector<8x32xf32>
    %25 = arith.mulf %20, %24 : vector<8x32xf32>
    %c0_10 = arith.constant 0 : index
    %c0_11 = arith.constant 0 : index
    %26 = vector.load %arg4[%c0_10, %c0_11] : memref<1x32xf32, #tpu.memory_space<vmem>>, vector<1x32xf32>
    %27 = vector.broadcast %26 : vector<1x32xf32> to vector<8x32xf32>
    %28 = arith.mulf %25, %27 : vector<8x32xf32>
    %c0_12 = arith.constant 0 : index
    %c0_13 = arith.constant 0 : index
    %29 = vector.load %arg5[%c0_12, %c0_13] : memref<1x32xf32, #tpu.memory_space<vmem>>, vector<1x32xf32>
    %30 = vector.broadcast %29 : vector<1x32xf32> to vector<8x32xf32>
    %31 = arith.addf %28, %30 : vector<8x32xf32>
    %32 = math.tanh %31 : vector<8x32xf32>
    %c0_14 = arith.constant 0 : index
    %c0_15 = arith.constant 0 : index
    %33 = vector.load %arg6[%c0_14, %c0_15] : memref<32x64xf32, #tpu.memory_space<vmem>>, vector<32x64xf32>
    %cst_16 = arith.constant dense<0.000000e+00> : vector<8x64xf32>
    %34 = tpu.matmul %32, %33, %cst_16 {dimension_numbers = #tpu.dot_dimension_numbers<[1], [0], [0], [1], [0, 0, 1, 1], [], []>} : vector<8x32xf32>, vector<32x64xf32>, vector<8x64xf32> -> vector<8x64xf32>
    %c0_17 = arith.constant 0 : index
    %c0_18 = arith.constant 0 : index
    %35 = vector.load %arg7[%c0_17, %c0_18] : memref<1x64xf32, #tpu.memory_space<vmem>>, vector<1x64xf32>
    %36 = vector.broadcast %35 : vector<1x64xf32> to vector<8x64xf32>
    %37 = arith.addf %34, %36 : vector<8x64xf32>
    %cst_19 = arith.constant 0.000000e+00 : f32
    %38 = vector.broadcast %cst_19 : f32 to vector<8x64xf32>
    %39 = arith.maximumf %37, %38 : vector<8x64xf32>
    %c0_20 = arith.constant 0 : index
    %c0_21 = arith.constant 0 : index
    %40 = vector.load %arg8[%c0_20, %c0_21] : memref<64x2xf32, #tpu.memory_space<vmem>>, vector<64x2xf32>
    %cst_22 = arith.constant dense<0.000000e+00> : vector<8x2xf32>
    %41 = tpu.matmul %39, %40, %cst_22 {dimension_numbers = #tpu.dot_dimension_numbers<[1], [0], [0], [1], [0, 0, 1, 1], [], []>} : vector<8x64xf32>, vector<64x2xf32>, vector<8x2xf32> -> vector<8x2xf32>
    %c0_23 = arith.constant 0 : index
    %c0_24 = arith.constant 0 : index
    %42 = vector.load %arg9[%c0_23, %c0_24] : memref<1x2xf32, #tpu.memory_space<vmem>>, vector<1x2xf32>
    %43 = vector.broadcast %42 : vector<1x2xf32> to vector<8x2xf32>
    %44 = arith.addf %41, %43 : vector<8x2xf32>
    %c0_25 = arith.constant 0 : index
    %c0_26 = arith.constant 0 : index
    %45 = vector.load %arg10[%c0_25, %c0_26] : memref<8x2xf32, #tpu.memory_space<vmem>>, vector<8x2xf32>
    tpu.vector_store %arg10[%c0_25, %c0_26], %44 {strides = array<i32>} : memref<8x2xf32, #tpu.memory_space<vmem>>, vector<8x2xf32>,
    return
  }
  func.func @transform_0(%arg0: i32) -> (i32, i32) {
    %c0_i32 = arith.constant 0 : i32
    %c0_i32_0 = arith.constant 0 : i32
    return %arg0, %c0_i32 : i32, i32
  }
  func.func @transform_1(%arg0: i32) -> (i32, i32) {
    %c0_i32 = arith.constant 0 : i32
    %c0_i32_0 = arith.constant 0 : i32
    %c0_i32_1 = arith.constant 0 : i32
    return %c0_i32, %c0_i32_0 : i32, i32
  }
  func.func @transform_2(%arg0: i32) -> (i32, i32) {
    %c0_i32 = arith.constant 0 : i32
    %c0_i32_0 = arith.constant 0 : i32
    %c0_i32_1 = arith.constant 0 : i32
    return %c0_i32, %c0_i32_0 : i32, i32
  }
  func.func @transform_3(%arg0: i32) -> (i32, i32) {
    %c0_i32 = arith.constant 0 : i32
    %c0_i32_0 = arith.constant 0 : i32
    %c0_i32_1 = arith.constant 0 : i32
    return %c0_i32, %c0_i32_0 : i32, i32
  }
  func.func @transform_4(%arg0: i32) -> (i32, i32) {
    %c0_i32 = arith.constant 0 : i32
    %c0_i32_0 = arith.constant 0 : i32
    %c0_i32_1 = arith.constant 0 : i32
    return %c0_i32, %c0_i32_0 : i32, i32
  }
  func.func @transform_5(%arg0: i32) -> (i32, i32) {
    %c0_i32 = arith.constant 0 : i32
    %c0_i32_0 = arith.constant 0 : i32
    %c0_i32_1 = arith.constant 0 : i32
    return %c0_i32, %c0_i32_0 : i32, i32
  }
  func.func @transform_6(%arg0: i32) -> (i32, i32) {
    %c0_i32 = arith.constant 0 : i32
    %c0_i32_0 = arith.constant 0 : i32
    %c0_i32_1 = arith.constant 0 : i32
    return %c0_i32, %c0_i32_0 : i32, i32
  }
  func.func @transform_7(%arg0: i32) -> (i32, i32) {
    %c0_i32 = arith.constant 0 : i32
    %c0_i32_0 = arith.constant 0 : i32
    %c0_i32_1 = arith.constant 0 : i32
    return %c0_i32, %c0_i32_0 : i32, i32
  }
  func.func @transform_8(%arg0: i32) -> (i32, i32) {
    %c0_i32 = arith.constant 0 : i32
    %c0_i32_0 = arith.constant 0 : i32
    %c0_i32_1 = arith.constant 0 : i32
    return %c0_i32, %c0_i32_0 : i32, i32
  }
  func.func @transform_9(%arg0: i32) -> (i32, i32) {
    %c0_i32 = arith.constant 0 : i32
    %c0_i32_0 = arith.constant 0 : i32
    return %arg0, %c0_i32 : i32, i32
  }
}

module attributes {stable_mosaic.version = 11 : i64} {
  func.func @_critic_kernel(%arg0: i32, %arg1: memref<8x16xf32, #tpu.memory_space<vmem>>, %arg2: memref<16x32xf32, #tpu.memory_space<vmem>>, %arg3: memref<1x32xf32, #tpu.memory_space<vmem>>, %arg4: memref<1x32xf32, #tpu.memory_space<vmem>>, %arg5: memref<1x32xf32, #tpu.memory_space<vmem>>, %arg6: memref<32x64xf32, #tpu.memory_space<vmem>>, %arg7: memref<1x64xf32, #tpu.memory_space<vmem>>, %arg8: memref<64x2xf32, #tpu.memory_space<vmem>>, %arg9: memref<1x2xf32, #tpu.memory_space<vmem>>, %arg10: memref<8x2xf32, #tpu.memory_space<vmem>>) attributes {dimension_semantics = [#tpu.dimension_semantics<parallel>], iteration_bounds = array<i64: 1>, scalar_prefetch = 0 : i64, scratch_operands = 0 : i64, tpu.core_type = #tpu.core_type<tc>, window_params = [{transform_indices = @transform_0, window_bounds = array<i64: 8, 16>}, {pipeline_mode = #tpu.pipeline_mode<synchronous>, transform_indices = @transform_1, window_bounds = array<i64: 16, 32>}, {pipeline_mode = #tpu.pipeline_mode<synchronous>, transform_indices = @transform_2, window_bounds = array<i64: 1, 32>}, {pipeline_mode = #tpu.pipeline_mode<synchronous>, transform_indices = @transform_3, window_bounds = array<i64: 1, 32>}, {pipeline_mode = #tpu.pipeline_mode<synchronous>, transform_indices = @transform_4, window_bounds = array<i64: 1, 32>}, {pipeline_mode = #tpu.pipeline_mode<synchronous>, transform_indices = @transform_5, window_bounds = array<i64: 32, 64>}, {pipeline_mode = #tpu.pipeline_mode<synchronous>, transform_indices = @transform_6, window_bounds = array<i64: 1, 64>}, {pipeline_mode = #tpu.pipeline_mode<synchronous>, transform_indices = @transform_7, window_bounds = array<i64: 64, 2>}, {pipeline_mode = #tpu.pipeline_mode<synchronous>, transform_indices = @transform_8, window_bounds = array<i64: 1, 2>}, {transform_indices = @transform_9, window_bounds = array<i64: 8, 2>}]} {
    %c0 = arith.constant 0 : index
    %c0_0 = arith.constant 0 : index
    %0 = vector.load %arg1[%c0, %c0_0] : memref<8x16xf32, #tpu.memory_space<vmem>>, vector<8x16xf32>
    %c0_1 = arith.constant 0 : index
    %c0_2 = arith.constant 0 : index
    %1 = vector.load %arg2[%c0_1, %c0_2] : memref<16x32xf32, #tpu.memory_space<vmem>>, vector<16x32xf32>
    %cst = arith.constant dense<0.000000e+00> : vector<8x32xf32>
    %2 = tpu.matmul %0, %1, %cst {dimension_numbers = #tpu.dot_dimension_numbers<[1], [0], [0], [1], [0, 0, 1, 1], [], []>} : vector<8x16xf32>, vector<16x32xf32>, vector<8x32xf32> -> vector<8x32xf32>
    %c0_3 = arith.constant 0 : index
    %c0_4 = arith.constant 0 : index
    %3 = vector.load %arg3[%c0_3, %c0_4] : memref<1x32xf32, #tpu.memory_space<vmem>>, vector<1x32xf32>
    %4 = vector.broadcast %3 : vector<1x32xf32> to vector<8x32xf32>
    %5 = arith.addf %2, %4 : vector<8x32xf32>
    %cst_5 = arith.constant dense<0.000000e+00> : vector<8xf32>
    %6 = vector.multi_reduction <add>, %5, %cst_5 [1] : vector<8x32xf32> to vector<8xf32>
    %7 = vector.shape_cast %6 : vector<8xf32> to vector<8x1xf32>
    %cst_6 = arith.constant 3.200000e+01 : f32
    %8 = vector.broadcast %cst_6 : f32 to vector<8x1xf32>
    %9 = arith.divf %7, %8 : vector<8x1xf32>
    %10 = vector.broadcast %9 : vector<8x1xf32> to vector<8x32xf32>
    %11 = arith.subf %5, %10 : vector<8x32xf32>
    %12 = vector.broadcast %9 : vector<8x1xf32> to vector<8x32xf32>
    %13 = arith.subf %5, %12 : vector<8x32xf32>
    %14 = arith.mulf %11, %13 : vector<8x32xf32>
    %cst_7 = arith.constant dense<0.000000e+00> : vector<8xf32>
    %15 = vector.multi_reduction <add>, %14, %cst_7 [1] : vector<8x32xf32> to vector<8xf32>
    %16 = vector.shape_cast %15 : vector<8xf32> to vector<8x1xf32>
    %cst_8 = arith.constant 3.200000e+01 : f32
    %17 = vector.broadcast %cst_8 : f32 to vector<8x1xf32>
    %18 = arith.divf %16, %17 : vector<8x1xf32>
    %19 = vector.broadcast %9 : vector<8x1xf32> to vector<8x32xf32>
    %20 = arith.subf %5, %19 : vector<8x32xf32>
    %cst_9 = arith.constant 9.99999974E-6 : f32
    %21 = vector.broadcast %cst_9 : f32 to vector<8x1xf32>
    %22 = arith.addf %18, %21 : vector<8x1xf32>
    %23 = math.rsqrt %22 : vector<8x1xf32>
    %24 = vector.broadcast %23 : vector<8x1xf32> to vector<8x32xf32>
    %25 = arith.mulf %20, %24 : vector<8x32xf32>
    %c0_10 = arith.constant 0 : index
    %c0_11 = arith.constant 0 : index
    %26 = vector.load %arg4[%c0_10, %c0_11] : memref<1x32xf32, #tpu.memory_space<vmem>>, vector<1x32xf32>
    %27 = vector.broadcast %26 : vector<1x32xf32> to vector<8x32xf32>
    %28 = arith.mulf %25, %27 : vector<8x32xf32>
    %c0_12 = arith.constant 0 : index
    %c0_13 = arith.constant 0 : index
    %29 = vector.load %arg5[%c0_12, %c0_13] : memref<1x32xf32, #tpu.memory_space<vmem>>, vector<1x32xf32>
    %30 = vector.broadcast %29 : vector<1x32xf32> to vector<8x32xf32>
    %31 = arith.addf %28, %30 : vector<8x32xf32>
    %32 = math.tanh %31 : vector<8x32xf32>
    %c0_14 = arith.constant 0 : index
    %c0_15 = arith.constant 0 : index
    %33 = vector.load %arg6[%c0_14, %c0_15] : memref<32x64xf32, #tpu.memory_space<vmem>>, vector<32x64xf32>
    %cst_16 = arith.constant dense<0.000000e+00> : vector<8x64xf32>
    %34 = tpu.matmul %32, %33, %cst_16 {dimension_numbers = #tpu.dot_dimension_numbers<[1], [0], [0], [1], [0, 0, 1, 1], [], []>} : vector<8x32xf32>, vector<32x64xf32>, vector<8x64xf32> -> vector<8x64xf32>
    %c0_17 = arith.constant 0 : index
    %c0_18 = arith.constant 0 : index
    %35 = vector.load %arg7[%c0_17, %c0_18] : memref<1x64xf32, #tpu.memory_space<vmem>>, vector<1x64xf32>
    %36 = vector.broadcast %35 : vector<1x64xf32> to vector<8x64xf32>
    %37 = arith.addf %34, %36 : vector<8x64xf32>
    %cst_19 = arith.constant 0.000000e+00 : f32
    %38 = vector.broadcast %cst_19 : f32 to vector<8x64xf32>
    %39 = arith.maximumf %37, %38 : vector<8x64xf32>
    %c0_20 = arith.constant 0 : index
    %c0_21 = arith.constant 0 : index
    %40 = vector.load %arg8[%c0_20, %c0_21] : memref<64x2xf32, #tpu.memory_space<vmem>>, vector<64x2xf32>
    %cst_22 = arith.constant dense<0.000000e+00> : vector<8x2xf32>
    %41 = tpu.matmul %39, %40, %cst_22 {dimension_numbers = #tpu.dot_dimension_numbers<[1], [0], [0], [1], [0, 0, 1, 1], [], []>} : vector<8x64xf32>, vector<64x2xf32>, vector<8x2xf32> -> vector<8x2xf32>
    %c0_23 = arith.constant 0 : index
    %c0_24 = arith.constant 0 : index
    %42 = vector.load %arg9[%c0_23, %c0_24] : memref<1x2xf32, #tpu.memory_space<vmem>>, vector<1x2xf32>
    %43 = vector.broadcast %42 : vector<1x2xf32> to vector<8x2xf32>
    %44 = arith.addf %41, %43 : vector<8x2xf32>
    %c0_25 = arith.constant 0 : index
    %c0_26 = arith.constant 0 : index
    %45 = vector.load %arg10[%c0_25, %c0_26] : memref<8x2xf32, #tpu.memory_space<vmem>>, vector<8x2xf32>
    tpu.vector_store %arg10[%c0_25, %c0_26], %44 {strides = array<i32>} : memref<8x2xf32, #tpu.memory_space<vmem>>, vector<8x2xf32>,
    return
  }
  func.func @transform_0(%arg0: i32) -> (i32, i32) {
    %c0_i32 = arith.constant 0 : i32
    %c0_i32_0 = arith.constant 0 : i32
    return %arg0, %c0_i32 : i32, i32
  }
  func.func @transform_1(%arg0: i32) -> (i32, i32) {
    %c0_i32 = arith.constant 0 : i32
    %c0_i32_0 = arith.constant 0 : i32
    %c0_i32_1 = arith.constant 0 : i32
    return %c0_i32, %c0_i32_0 : i32, i32
  }
  func.func @transform_2(%arg0: i32) -> (i32, i32) {
    %c0_i32 = arith.constant 0 : i32
    %c0_i32_0 = arith.constant 0 : i32
    %c0_i32_1 = arith.constant 0 : i32
    return %c0_i32, %c0_i32_0 : i32, i32
  }
  func.func @transform_3(%arg0: i32) -> (i32, i32) {
    %c0_i32 = arith.constant 0 : i32
    %c0_i32_0 = arith.constant 0 : i32
    %c0_i32_1 = arith.constant 0 : i32
    return %c0_i32, %c0_i32_0 : i32, i32
  }
  func.func @transform_4(%arg0: i32) -> (i32, i32) {
    %c0_i32 = arith.constant 0 : i32
    %c0_i32_0 = arith.constant 0 : i32
    %c0_i32_1 = arith.constant 0 : i32
    return %c0_i32, %c0_i32_0 : i32, i32
  }
  func.func @transform_5(%arg0: i32) -> (i32, i32) {
    %c0_i32 = arith.constant 0 : i32
    %c0_i32_0 = arith.constant 0 : i32
    %c0_i32_1 = arith.constant 0 : i32
    return %c0_i32, %c0_i32_0 : i32, i32
  }
  func.func @transform_6(%arg0: i32) -> (i32, i32) {
    %c0_i32 = arith.constant 0 : i32
    %c0_i32_0 = arith.constant 0 : i32
    %c0_i32_1 = arith.constant 0 : i32
    return %c0_i32, %c0_i32_0 : i32, i32
  }
  func.func @transform_7(%arg0: i32) -> (i32, i32) {
    %c0_i32 = arith.constant 0 : i32
    %c0_i32_0 = arith.constant 0 : i32
    %c0_i32_1 = arith.constant 0 : i32
    return %c0_i32, %c0_i32_0 : i32, i32
  }
  func.func @transform_8(%arg0: i32) -> (i32, i32) {
    %c0_i32 = arith.constant 0 : i32
    %c0_i32_0 = arith.constant 0 : i32
    %c0_i32_1 = arith.constant 0 : i32
    return %c0_i32, %c0_i32_0 : i32, i32
  }
  func.func @transform_9(%arg0: i32) -> (i32, i32) {
    %c0_i32 = arith.constant 0 : i32
    %c0_i32_0 = arith.constant 0 : i32
    return %arg0, %c0_i32 : i32, i32
  }
}

</mosaic_0001>

<llo_original>
// kernel: tpu_custom_call.1
$region0: #{tpu_custom_call.1}
  #allocation0 [shape = 'u32[]', space=smem, size = 0x4, offset = 0x4, fixed_abs, tag = 'smem constant byte address 0x4 - core index']
  #allocation1 [shape = 'u32[72,128]{1,0:T(1,128)}', space=vmem, size = 0x9000, scoped, tag = 'internal scratch']
  %s0 = inlined_call_operand.vmem [shape: f32[8,16], index: 0, kind: input, shape index: {}]
  %s1 = inlined_call_operand.vmem [shape: f32[16,32], index: 1, kind: input, shape index: {}]
  %s2 = inlined_call_operand.vmem [shape: f32[1,32], index: 2, kind: input, shape index: {}]
  %s3 = inlined_call_operand.vmem [shape: f32[1,32], index: 3, kind: input, shape index: {}]
  %s4 = inlined_call_operand.vmem [shape: f32[1,32], index: 4, kind: input, shape index: {}]
  %s5 = inlined_call_operand.vmem [shape: f32[32,64], index: 5, kind: input, shape index: {}]
  %s6 = inlined_call_operand.vmem [shape: f32[1,64], index: 6, kind: input, shape index: {}]
  %s7 = inlined_call_operand.vmem [shape: f32[64,2], index: 7, kind: input, shape index: {}]
  %s8 = inlined_call_operand.vmem [shape: f32[1,2], index: 8, kind: input, shape index: {}]
  %s9 = inlined_call_operand.vmem [shape: f32[8,2], index: 9, kind: output, shape index: {}]
  %s10 = sld [smem:[#allocation0]]
  $region46: #{tpu_custom_call.1} parent=0
    _
  %s12 = ssub.s32 1, %s10
  %s13 = scalar_select 0, %s12, %s10
  // Predicated region
  $region2: #{tpu_custom_call.1} parent=0 // pred_check
    _
  $region3: #{tpu_custom_call.1} parent=0 // pred_check_branch
    %15 = sbr.rel (0) target = $region5
  $region4: #{tpu_custom_call.1} parent=0 // pred_region
    _
  $region5: #{tpu_custom_call.1} parent=0 // pred_fallthru
    _
  // Predicated region
  $region6: #{tpu_custom_call.1} parent=0 // pred_check
    _
  $region7: #{tpu_custom_call.1} parent=0 // pred_check_branch
    %17 = sbr.rel (0) target = $region9
  $region8: #{tpu_custom_call.1} parent=0 // pred_region
    _
  $region9: #{tpu_custom_call.1} parent=0 // pred_fallthru
    _
  // Predicated region
  $region10: #{tpu_custom_call.1} parent=0 // pred_check
    _
  $region11: #{tpu_custom_call.1} parent=0 // pred_check_branch
    %19 = sbr.rel (0) target = $region13
  $region12: #{tpu_custom_call.1} parent=0 // pred_region
    _
  $region13: #{tpu_custom_call.1} parent=0 // pred_fallthru
    _
  // Predicated region
  $region14: #{tpu_custom_call.1} parent=0 // pred_check
    _
  $region15: #{tpu_custom_call.1} parent=0 // pred_check_branch
    %21 = sbr.rel (0) target = $region17
  $region16: #{tpu_custom_call.1} parent=0 // pred_region
    _
  $region17: #{tpu_custom_call.1} parent=0 // pred_fallthru
    _
  // Predicated region
  $region18: #{tpu_custom_call.1} parent=0 // pred_check
    _
  $region19: #{tpu_custom_call.1} parent=0 // pred_check_branch
    %23 = sbr.rel (0) target = $region21
  $region20: #{tpu_custom_call.1} parent=0 // pred_region
    _
  $region21: #{tpu_custom_call.1} parent=0 // pred_fallthru
    _
  // Predicated region
  $region22: #{tpu_custom_call.1} parent=0 // pred_check
    _
  $region23: #{tpu_custom_call.1} parent=0 // pred_check_branch
    %25 = sbr.rel (0) target = $region25
  $region24: #{tpu_custom_call.1} parent=0 // pred_region
    _
  $region25: #{tpu_custom_call.1} parent=0 // pred_fallthru
    _
  // Predicated region
  $region26: #{tpu_custom_call.1} parent=0 // pred_check
    _
  $region27: #{tpu_custom_call.1} parent=0 // pred_check_branch
    %27 = sbr.rel (0) target = $region29
  $region28: #{tpu_custom_call.1} parent=0 // pred_region
    _
  $region29: #{tpu_custom_call.1} parent=0 // pred_fallthru
    _
  // Predicated region
  $region30: #{tpu_custom_call.1} parent=0 // pred_check
    _
  $region31: #{tpu_custom_call.1} parent=0 // pred_check_branch
    %29 = sbr.rel (0) target = $region33
  $region32: #{tpu_custom_call.1} parent=0 // pred_region
    _
  $region33: #{tpu_custom_call.1} parent=0 // pred_fallthru
    _
  // Predicated region
  $region34: #{tpu_custom_call.1} parent=0 // pred_check
    _
  $region35: #{tpu_custom_call.1} parent=0 // pred_check_branch
    %31 = sbr.rel (0) target = $region37
  $region36: #{tpu_custom_call.1} parent=0 // pred_region
    _
  $region37: #{tpu_custom_call.1} parent=0 // pred_fallthru
    _
  %v32 = vld [vmem:[%s0] sm:$0xff]
  %v33 = vld [vmem:[%s1] sm:$0xff]
  %v34 = vld [vmem:[%s1 + $0x8] sm:$0xff]
  %v35 = vld [vmem:[%s2] sm:$0x1]
  %v37 = vperm.slane %v35, 0
  %vm39 = vcmask 130048
  %v41 = vsel %vm39, %v32, 0
  %43 = vmatpush.msra.mxu0 0.0
  %44 = vmatpush.msra.mxu0 0.0
  %45 = vmatpush.msra.mxu0 0.0
  %46 = vmatpush.msra.mxu0 0.0
  %47 = vmatpush.msra.mxu0 0.0
  %48 = vmatpush.msra.mxu0 0.0
  %49 = vmatpush.msra.mxu0 0.0
  %50 = vmatpush.msra.mxu0 0.0
  %51 = vmatpush.msra.mxu0 0.0
  %52 = vmatpush.msra.mxu0 0.0
  %53 = vmatpush.msra.mxu0 0.0
  %54 = vmatpush.msra.mxu0 0.0
  %55 = vmatpush.msra.mxu0 0.0
  %56 = vmatpush.msra.mxu0 0.0
  %57 = vmatpush.msra.mxu0 %v34
  %58 = vmatpush.msra.mxu0 %v33
  %59 = vmatmul.f32.gmra.mxu0 %v41
  %v60 = vpop.f32.mrf.mxu0
  %v61 = vadd.f32 %v37, %v60
  %62 = vdwg.mxu0
  %vm63 = vcmask 261120
  %v64 = vsel %vm63, %v61, 0.0
  %65 = vadd.xlane.f32.xlu0 %v64
  %v66 = vpop.xlane.xlu0 %65
  %v67 = vrcp.pop 32.0
  %v68 = vmul.f32 32.0, %v67
  %v69 = vsub.f32 1.0, %v68
  %v70 = vmul.f32 %v67, %v69
  %v71 = vadd.f32 %v67, %v70
  %vm72 = vweird.f32 %v67
  %v73 = vsel %vm72, %v67, %v71
  %v74 = vmul.f32 %v66, %v73
  %v75 = vsub.f32 %v61, %v74
  %v76 = vmul.f32 %v75, %v75
  %v77 = vsel %vm63, %v76, 0.0
  %78 = vadd.xlane.f32.xlu0 %v77
  %v79 = vpop.xlane.xlu0 %78
  %v80 = vmul.f32 %v79, %v73
  %v81 = vadd.f32 %v80, 1e-05
  %v82 = vrsqrt.pop %v81
  %v83 = vmul.f32 %v82, %v81
  %v84 = vmul.f32 %v83, %v82
  %v85 = vmul.f32 0.5, %v84
  %v86 = vsub.f32 1.5, %v85
  %v87 = vmul.f32 %v82, %v86
  %vm88 = vweird.f32 %v81
  %vm89 = vweird.f32 %v82
  %vm90 = vmor %vm88, %vm89
  %v91 = vsel %vm90, %v82, %v87
  %v92 = vmul.f32 %v75, %v91
  %v93 = vld [vmem:[%s3] sm:$0x1]
  %v95 = vperm.slane %v93, 0
  %v97 = vmul.f32 %v92, %v95
  %v98 = vld [vmem:[%s4] sm:$0x1]
  %v100 = vperm.slane %v98, 0
  %v102 = vadd.f32 %v97, %v100
  %v103 = vtanh.pop %v102
  %v104 = vld [vmem:[%s5] sm:$0xff]
  %v105 = vld [vmem:[%s5 + $0x8] sm:$0xff]
  %v106 = vld [vmem:[%s5 + $0x10] sm:$0xff]
  %v107 = vld [vmem:[%s5 + $0x18] sm:$0xff]
  %v108 = vld [vmem:[%s6] sm:$0x1]
  %v110 = vperm.slane %v108, 0
  %v113 = vsel %vm63, %v103, 0
  %115 = vmatpush.msra.mxu0 0.0
  %116 = vmatpush.msra.mxu0 0.0
  %117 = vmatpush.msra.mxu0 0.0
  %118 = vmatpush.msra.mxu0 0.0
  %119 = vmatpush.msra.mxu0 0.0
  %120 = vmatpush.msra.mxu0 0.0
  %121 = vmatpush.msra.mxu0 0.0
  %122 = vmatpush.msra.mxu0 0.0
  %123 = vmatpush.msra.mxu0 0.0
  %124 = vmatpush.msra.mxu0 0.0
  %125 = vmatpush.msra.mxu0 0.0
  %126 = vmatpush.msra.mxu0 0.0
  %127 = vmatpush.msra.mxu0 %v107
  %128 = vmatpush.msra.mxu0 %v106
  %129 = vmatpush.msra.mxu0 %v105
  %130 = vmatpush.msra.mxu0 %v104
  %131 = vmatmul.f32.gmra.mxu0 %v113
  %v132 = vpop.f32.mrf.mxu0
  %v133 = vadd.f32 %v110, %v132
  %134 = vdwg.mxu0
  %v135 = vmax.f32 %v133, 0.0
  %v136 = vld [vmem:[%s7] sm:$0xff]
  %v137 = vld [vmem:[%s7 + $0x8] sm:$0xff]
  %v138 = vld [vmem:[%s7 + $0x10] sm:$0xff]
  %v139 = vld [vmem:[%s7 + $0x18] sm:$0xff]
  %v140 = vld [vmem:[%s7 + $0x20] sm:$0xff]
  %v141 = vld [vmem:[%s7 + $0x28] sm:$0xff]
  %v142 = vld [vmem:[%s7 + $0x30] sm:$0xff]
  %v143 = vld [vmem:[%s7 + $0x38] sm:$0xff]
  %v144 = vld [vmem:[%s8] sm:$0x1]
  %v146 = vperm.slane %v144, 0
  %vm148 = vcmask 523264
  %v150 = vsel %vm148, %v135, 0
  %152 = vmatpush.msra.mxu0 0.0
  %153 = vmatpush.msra.mxu0 0.0
  %154 = vmatpush.msra.mxu0 0.0
  %155 = vmatpush.msra.mxu0 0.0
  %156 = vmatpush.msra.mxu0 0.0
  %157 = vmatpush.msra.mxu0 0.0
  %158 = vmatpush.msra.mxu0 0.0
  %159 = vmatpush.msra.mxu0 0.0
  %160 = vmatpush.msra.mxu0 %v143
  %161 = vmatpush.msra.mxu0 %v142
  %162 = vmatpush.msra.mxu0 %v141
  %163 = vmatpush.msra.mxu0 %v140
  %164 = vmatpush.msra.mxu0 %v139
  %165 = vmatpush.msra.mxu0 %v138
  %166 = vmatpush.msra.mxu0 %v137
  %167 = vmatpush.msra.mxu0 %v136
  %168 = vmatmul.f32.gmra.mxu0 %v150
  %v169 = vpop.f32.mrf.mxu0
  %v170 = vadd.f32 %v146, %v169
  %171 = vdwg.mxu0
  %vm172 = vcmask 15360
  %173 = vst.msk [vmem:[%s9] sm:$0xff] %vm172, %v170
  // Predicated region
  $region38: #{tpu_custom_call.1} parent=0 // pred_check
    _
  $region39: #{tpu_custom_call.1} parent=0 // pred_check_branch
    %175 = sbr.rel (0) target = $region41
  $region40: #{tpu_custom_call.1} parent=0 // pred_region
    _
  $region41: #{tpu_custom_call.1} parent=0 // pred_fallthru
    _
  // Predicated region
  $region42: #{tpu_custom_call.1} parent=0 // pred_check
    _
  $region43: #{tpu_custom_call.1} parent=0 // pred_check_branch
    %177 = sbr.rel (0) target = $region45
  $region44: #{tpu_custom_call.1} parent=0 // pred_region
    _
  $region45: #{tpu_custom_call.1} parent=0 // pred_fallthru
    _

// kernel: tpu_custom_call.1
$region0: #{tpu_custom_call.1}
  #allocation0 [shape = 'u32[]', space=smem, size = 0x4, offset = 0x4, fixed_abs, tag = 'smem constant byte address 0x4 - core index']
  #allocation1 [shape = 'u32[72,128]{1,0:T(1,128)}', space=vmem, size = 0x9000, scoped, tag = 'internal scratch']
  %s0 = inlined_call_operand.vmem [shape: f32[8,16], index: 0, kind: input, shape index: {}]
  %s1 = inlined_call_operand.vmem [shape: f32[16,32], index: 1, kind: input, shape index: {}]
  %s2 = inlined_call_operand.vmem [shape: f32[1,32], index: 2, kind: input, shape index: {}]
  %s3 = inlined_call_operand.vmem [shape: f32[1,32], index: 3, kind: input, shape index: {}]
  %s4 = inlined_call_operand.vmem [shape: f32[1,32], index: 4, kind: input, shape index: {}]
  %s5 = inlined_call_operand.vmem [shape: f32[32,64], index: 5, kind: input, shape index: {}]
  %s6 = inlined_call_operand.vmem [shape: f32[1,64], index: 6, kind: input, shape index: {}]
  %s7 = inlined_call_operand.vmem [shape: f32[64,2], index: 7, kind: input, shape index: {}]
  %s8 = inlined_call_operand.vmem [shape: f32[1,2], index: 8, kind: input, shape index: {}]
  %s9 = inlined_call_operand.vmem [shape: f32[8,2], index: 9, kind: output, shape index: {}]
  %s10 = sld [smem:[#allocation0]]
  $region46: #{tpu_custom_call.1} parent=0
    _
  %s12 = ssub.s32 1, %s10
  %s13 = scalar_select 0, %s12, %s10
  // Predicated region
  $region2: #{tpu_custom_call.1} parent=0 // pred_check
    _
  $region3: #{tpu_custom_call.1} parent=0 // pred_check_branch
    %15 = sbr.rel (0) target = $region5
  $region4: #{tpu_custom_call.1} parent=0 // pred_region
    _
  $region5: #{tpu_custom_call.1} parent=0 // pred_fallthru
    _
  // Predicated region
  $region6: #{tpu_custom_call.1} parent=0 // pred_check
    _
  $region7: #{tpu_custom_call.1} parent=0 // pred_check_branch
    %17 = sbr.rel (0) target = $region9
  $region8: #{tpu_custom_call.1} parent=0 // pred_region
    _
  $region9: #{tpu_custom_call.1} parent=0 // pred_fallthru
    _
  // Predicated region
  $region10: #{tpu_custom_call.1} parent=0 // pred_check
    _
  $region11: #{tpu_custom_call.1} parent=0 // pred_check_branch
    %19 = sbr.rel (0) target = $region13
  $region12: #{tpu_custom_call.1} parent=0 // pred_region
    _
  $region13: #{tpu_custom_call.1} parent=0 // pred_fallthru
    _
  // Predicated region
  $region14: #{tpu_custom_call.1} parent=0 // pred_check
    _
  $region15: #{tpu_custom_call.1} parent=0 // pred_check_branch
    %21 = sbr.rel (0) target = $region17
  $region16: #{tpu_custom_call.1} parent=0 // pred_region
    _
  $region17: #{tpu_custom_call.1} parent=0 // pred_fallthru
    _
  // Predicated region
  $region18: #{tpu_custom_call.1} parent=0 // pred_check
    _
  $region19: #{tpu_custom_call.1} parent=0 // pred_check_branch
    %23 = sbr.rel (0) target = $region21
  $region20: #{tpu_custom_call.1} parent=0 // pred_region
    _
  $region21: #{tpu_custom_call.1} parent=0 // pred_fallthru
    _
  // Predicated region
  $region22: #{tpu_custom_call.1} parent=0 // pred_check
    _
  $region23: #{tpu_custom_call.1} parent=0 // pred_check_branch
    %25 = sbr.rel (0) target = $region25
  $region24: #{tpu_custom_call.1} parent=0 // pred_region
    _
  $region25: #{tpu_custom_call.1} parent=0 // pred_fallthru
    _
  // Predicated region
  $region26: #{tpu_custom_call.1} parent=0 // pred_check
    _
  $region27: #{tpu_custom_call.1} parent=0 // pred_check_branch
    %27 = sbr.rel (0) target = $region29
  $region28: #{tpu_custom_call.1} parent=0 // pred_region
    _
  $region29: #{tpu_custom_call.1} parent=0 // pred_fallthru
    _
  // Predicated region
  $region30: #{tpu_custom_call.1} parent=0 // pred_check
    _
  $region31: #{tpu_custom_call.1} parent=0 // pred_check_branch
    %29 = sbr.rel (0) target = $region33
  $region32: #{tpu_custom_call.1} parent=0 // pred_region
    _
  $region33: #{tpu_custom_call.1} parent=0 // pred_fallthru
    _
  // Predicated region
  $region34: #{tpu_custom_call.1} parent=0 // pred_check
    _
  $region35: #{tpu_custom_call.1} parent=0 // pred_check_branch
    %31 = sbr.rel (0) target = $region37
  $region36: #{tpu_custom_call.1} parent=0 // pred_region
    _
  $region37: #{tpu_custom_call.1} parent=0 // pred_fallthru
    _
  %v32 = vld [vmem:[%s0] sm:$0xff]
  %v33 = vld [vmem:[%s1] sm:$0xff]
  %v34 = vld [vmem:[%s1 + $0x8] sm:$0xff]
  %v35 = vld [vmem:[%s2] sm:$0x1]
  %v37 = vperm.slane %v35, 0
  %vm39 = vcmask 130048
  %v41 = vsel %vm39, %v32, 0
  %43 = vmatpush.msra.mxu0 0.0
  %44 = vmatpush.msra.mxu0 0.0
  %45 = vmatpush.msra.mxu0 0.0
  %46 = vmatpush.msra.mxu0 0.0
  %47 = vmatpush.msra.mxu0 0.0
  %48 = vmatpush.msra.mxu0 0.0
  %49 = vmatpush.msra.mxu0 0.0
  %50 = vmatpush.msra.mxu0 0.0
  %51 = vmatpush.msra.mxu0 0.0
  %52 = vmatpush.msra.mxu0 0.0
  %53 = vmatpush.msra.mxu0 0.0
  %54 = vmatpush.msra.mxu0 0.0
  %55 = vmatpush.msra.mxu0 0.0
  %56 = vmatpush.msra.mxu0 0.0
  %57 = vmatpush.msra.mxu0 %v34
  %58 = vmatpush.msra.mxu0 %v33
  %59 = vmatmul.f32.gmra.mxu0 %v41
  %v60 = vpop.f32.mrf.mxu0
  %v61 = vadd.f32 %v37, %v60
  %62 = vdwg.mxu0
  %vm63 = vcmask 261120
  %v64 = vsel %vm63, %v61, 0.0
  %65 = vadd.xlane.f32.xlu0 %v64
  %v66 = vpop.xlane.xlu0 %65
  %v67 = vrcp.pop 32.0
  %v68 = vmul.f32 32.0, %v67
  %v69 = vsub.f32 1.0, %v68
  %v70 = vmul.f32 %v67, %v69
  %v71 = vadd.f32 %v67, %v70
  %vm72 = vweird.f32 %v67
  %v73 = vsel %vm72, %v67, %v71
  %v74 = vmul.f32 %v66, %v73
  %v75 = vsub.f32 %v61, %v74
  %v76 = vmul.f32 %v75, %v75
  %v77 = vsel %vm63, %v76, 0.0
  %78 = vadd.xlane.f32.xlu0 %v77
  %v79 = vpop.xlane.xlu0 %78
  %v80 = vmul.f32 %v79, %v73
  %v81 = vadd.f32 %v80, 1e-05
  %v82 = vrsqrt.pop %v81
  %v83 = vmul.f32 %v82, %v81
  %v84 = vmul.f32 %v83, %v82
  %v85 = vmul.f32 0.5, %v84
  %v86 = vsub.f32 1.5, %v85
  %v87 = vmul.f32 %v82, %v86
  %vm88 = vweird.f32 %v81
  %vm89 = vweird.f32 %v82
  %vm90 = vmor %vm88, %vm89
  %v91 = vsel %vm90, %v82, %v87
  %v92 = vmul.f32 %v75, %v91
  %v93 = vld [vmem:[%s3] sm:$0x1]
  %v95 = vperm.slane %v93, 0
  %v97 = vmul.f32 %v92, %v95
  %v98 = vld [vmem:[%s4] sm:$0x1]
  %v100 = vperm.slane %v98, 0
  %v102 = vadd.f32 %v97, %v100
  %v103 = vtanh.pop %v102
  %v104 = vld [vmem:[%s5] sm:$0xff]
  %v105 = vld [vmem:[%s5 + $0x8] sm:$0xff]
  %v106 = vld [vmem:[%s5 + $0x10] sm:$0xff]
  %v107 = vld [vmem:[%s5 + $0x18] sm:$0xff]
  %v108 = vld [vmem:[%s6] sm:$0x1]
  %v110 = vperm.slane %v108, 0
  %v113 = vsel %vm63, %v103, 0
  %115 = vmatpush.msra.mxu0 0.0
  %116 = vmatpush.msra.mxu0 0.0
  %117 = vmatpush.msra.mxu0 0.0
  %118 = vmatpush.msra.mxu0 0.0
  %119 = vmatpush.msra.mxu0 0.0
  %120 = vmatpush.msra.mxu0 0.0
  %121 = vmatpush.msra.mxu0 0.0
  %122 = vmatpush.msra.mxu0 0.0
  %123 = vmatpush.msra.mxu0 0.0
  %124 = vmatpush.msra.mxu0 0.0
  %125 = vmatpush.msra.mxu0 0.0
  %126 = vmatpush.msra.mxu0 0.0
  %127 = vmatpush.msra.mxu0 %v107
  %128 = vmatpush.msra.mxu0 %v106
  %129 = vmatpush.msra.mxu0 %v105
  %130 = vmatpush.msra.mxu0 %v104
  %131 = vmatmul.f32.gmra.mxu0 %v113
  %v132 = vpop.f32.mrf.mxu0
  %v133 = vadd.f32 %v110, %v132
  %134 = vdwg.mxu0
  %v135 = vmax.f32 %v133, 0.0
  %v136 = vld [vmem:[%s7] sm:$0xff]
  %v137 = vld [vmem:[%s7 + $0x8] sm:$0xff]
  %v138 = vld [vmem:[%s7 + $0x10] sm:$0xff]
  %v139 = vld [vmem:[%s7 + $0x18] sm:$0xff]
  %v140 = vld [vmem:[%s7 + $0x20] sm:$0xff]
  %v141 = vld [vmem:[%s7 + $0x28] sm:$0xff]
  %v142 = vld [vmem:[%s7 + $0x30] sm:$0xff]
  %v143 = vld [vmem:[%s7 + $0x38] sm:$0xff]
  %v144 = vld [vmem:[%s8] sm:$0x1]
  %v146 = vperm.slane %v144, 0
  %vm148 = vcmask 523264
  %v150 = vsel %vm148, %v135, 0
  %152 = vmatpush.msra.mxu0 0.0
  %153 = vmatpush.msra.mxu0 0.0
  %154 = vmatpush.msra.mxu0 0.0
  %155 = vmatpush.msra.mxu0 0.0
  %156 = vmatpush.msra.mxu0 0.0
  %157 = vmatpush.msra.mxu0 0.0
  %158 = vmatpush.msra.mxu0 0.0
  %159 = vmatpush.msra.mxu0 0.0
  %160 = vmatpush.msra.mxu0 %v143
  %161 = vmatpush.msra.mxu0 %v142
  %162 = vmatpush.msra.mxu0 %v141
  %163 = vmatpush.msra.mxu0 %v140
  %164 = vmatpush.msra.mxu0 %v139
  %165 = vmatpush.msra.mxu0 %v138
  %166 = vmatpush.msra.mxu0 %v137
  %167 = vmatpush.msra.mxu0 %v136
  %168 = vmatmul.f32.gmra.mxu0 %v150
  %v169 = vpop.f32.mrf.mxu0
  %v170 = vadd.f32 %v146, %v169
  %171 = vdwg.mxu0
  %vm172 = vcmask 15360
  %173 = vst.msk [vmem:[%s9] sm:$0xff] %vm172, %v170
  // Predicated region
  $region38: #{tpu_custom_call.1} parent=0 // pred_check
    _
  $region39: #{tpu_custom_call.1} parent=0 // pred_check_branch
    %175 = sbr.rel (0) target = $region41
  $region40: #{tpu_custom_call.1} parent=0 // pred_region
    _
  $region41: #{tpu_custom_call.1} parent=0 // pred_fallthru
    _
  // Predicated region
  $region42: #{tpu_custom_call.1} parent=0 // pred_check
    _
  $region43: #{tpu_custom_call.1} parent=0 // pred_check_branch
    %177 = sbr.rel (0) target = $region45
  $region44: #{tpu_custom_call.1} parent=0 // pred_region
    _
  $region45: #{tpu_custom_call.1} parent=0 // pred_fallthru
    _

</llo_original>
